<compile_context>
chip_gen: v5e
topology: v5e:2x2
jax: 0.10.0
libtpu: 0.0.40
codegen_flags: <defaults>
</compile_context>

<pallas_src>
import jax
import jax.numpy as jnp
from jax import lax
from jax.experimental import pallas as pl
from jax.experimental.pallas import tpu as pltpu


def _round_up(x, m):
    return (x + m - 1) // m * m


def _finalize(acc_ref, w_ref, b_ref, out_ref, S, lhs_dtype):
    # Fold the 1/S mean onto the small [TB, TO] result instead of the [TB, D] pool.
    lhs = acc_ref[...]
    if lhs_dtype is not None:                      # bf16 tables -> bf16 MXU rate
        lhs = lhs.astype(lhs_dtype)
    out_ref[...] = (
        jnp.dot(lhs, w_ref[...], preferred_element_type=jnp.float32)
        * jnp.float32(1.0 / S)
        + b_ref[...]
    ).astype(out_ref.dtype)


def _make_vmem_kernel(TB, S, D_pad, B_total, lhs_dtype):
    """Fast path: embedding table resident in VMEM; register-carried row sums."""

    def kernel(tok_ref,    # SMEM [TB, S] int32   (per-tile token ids)
               emb_ref,    # VMEM [V_pad, D_pad]  (whole table)
               w_ref,      # VMEM [D_pad, TO]
               b_ref,      # VMEM [1, TO]
               out_ref,    # VMEM [TB, TO]
               acc_ref):   # VMEM scratch [TB, D_pad] f32 (seq sums; reused over ot)
        bt = pl.program_id(0)
        ot = pl.program_id(1)

        @pl.when(ot == 0)
        def _():
            acc_ref[...] = jnp.zeros_like(acc_ref)
            nb = jnp.minimum(TB, B_total - bt * TB)        # skip padded batch rows

            @pl.loop(0, nb)
            def _(b_local):
                def tok_body(s, row_sum):
                    tok = tok_ref[b_local, s]
                    row = emb_ref[pl.ds(tok, 1), :].astype(jnp.float32)  # [1, D_pad]
                    return row_sum + row

                row_sum = lax.fori_loop(
                    0, S, tok_body, jnp.zeros((1, D_pad), jnp.float32),
                    unroll=(S <= 16))
                acc_ref[pl.ds(b_local, 1), :] = row_sum    # one store per batch row

        _finalize(acc_ref, w_ref, b_ref, out_ref, S, lhs_dtype)

    return kernel


def _make_hbm_kernel(TB, S, D_pad, B_total, lhs_dtype):
    """Large-vocab path: table stays in HBM; chunked, double-buffered row gather."""

    def kernel(tok_ref,    # SMEM [TB, S] int32
               emb_hbm,    # ANY/HBM [V, D_pad]
               w_ref,      # VMEM [D_pad, TO]
               b_ref,      # VMEM [1, TO]
               out_ref,    # VMEM [TB, TO]
               stage,      # VMEM scratch [2, S, D_pad]   (chunk double buffer)
               sems,       # DMA semaphores (2,)
               acc_ref):   # VMEM scratch [TB, D_pad] f32
        bt = pl.program_id(0)
        ot = pl.program_id(1)

        def chunk_copy(b_local, s, slot):
            # Identical descriptor is used for .start() and .wait() (same slices).
            tok = tok_ref[b_local, s]
            return pltpu.make_async_copy(
                emb_hbm.at[pl.ds(tok, 1), :],
                stage.at[slot, pl.ds(s, 1), :],
                sems.at[slot])

        def fetch_chunk(b_local, slot):            # issue all S row DMAs of a chunk
            @pl.loop(0, S)
            def _(s):
                chunk_copy(b_local, s, slot).start()

        def wait_chunk(b_local, slot):             # drain the chunk's semaphore
            @pl.loop(0, S)
            def _(s):
                chunk_copy(b_local, s, slot).wait()

        @pl.when(ot == 0)
        def _():
            acc_ref[...] = jnp.zeros_like(acc_ref)
            nb = jnp.minimum(TB, B_total - bt * TB)        # skip padded batch rows

            fetch_chunk(0, 0)                              # prime slot 0

            @pl.loop(0, nb)
            def _(b_local):
                slot = b_local % 2

                @pl.when(b_local + 1 < nb)                 # keep next chunk in flight
                def _():
                    fetch_chunk(b_local + 1, 1 - slot)

                wait_chunk(b_local, slot)
                block = stage[slot].astype(jnp.float32)    # [S, D_pad]
                acc_ref[pl.ds(b_local, 1), :] = jnp.sum(block, axis=0, keepdims=True)

        _finalize(acc_ref, w_ref, b_ref, out_ref, S, lhs_dtype)

    return kernel


def fasttext_forward(x_tokens, emb_table, w, b, *,
                     batch_tile=64, out_tile=1024,
                     vmem_table_budget_bytes=6 * 2**20,
                     force_hbm_gather=False):
    """x_tokens: [S, B] int; emb_table: [V, D]; w: [D, O]; b: [O] -> [B, O] f32."""
    S, B = x_tokens.shape
    V, D = emb_table.shape
    O = w.shape[1]
    emb_itemsize = jnp.dtype(emb_table.dtype).itemsize

    # ---- padding / tiling -------------------------------------------------
    D_pad = _round_up(D, 128)                  # lane-dense accumulator / matmul K
    O_pad = _round_up(O, 128)                  # lane-dense output (unmasked vst)

    B8 = _round_up(B, 8)
    TB = min(_round_up(min(batch_tile, B8), 8), B8)
    if B8 // TB < 2 and B8 >= 16:              # give both v7x TensorCores work
        TB = _round_up(pl.cdiv(B8, 2), 8)
    B_pad = _round_up(B8, TB)
    n_bt = B_pad // TB

    TO = min(_round_up(min(out_tile, O_pad), 128), O_pad)
    O_padf = _round_up(O_pad, TO)              # O grid axis bounds the weight tile
    n_ot = O_padf // TO

    V_pad = _round_up(V, 8)
    table_bytes = V_pad * D_pad * emb_itemsize
    use_vmem_table = (not force_hbm_gather) and table_bytes <= vmem_table_budget_bytes

    lhs_dtype = jnp.bfloat16 if (emb_table.dtype == jnp.bfloat16
                                 and w.dtype == jnp.bfloat16) else None

    # ---- host-side padding / layout (plumbing only, no compute hoisted) ---
    tok = jnp.zeros((B_pad, S), jnp.int32).at[:B, :].set(
        x_tokens.astype(jnp.int32).T)                           # [B_pad, S]
    w_pad = jnp.zeros((D_pad, O_padf), w.dtype).at[:D, :O].set(w)
    b_pad = jnp.zeros((1, O_padf), jnp.float32).at[0, :O].set(b.astype(jnp.float32))

    if use_vmem_table:
        emb_in = jnp.zeros((V_pad, D_pad), emb_table.dtype).at[:V, :D].set(emb_table)
        emb_spec = pl.BlockSpec((V_pad, D_pad), lambda bt, ot: (0, 0))
        kernel = _make_vmem_kernel(TB, S, D_pad, B, lhs_dtype)
        scratch = [pltpu.VMEM((TB, D_pad), jnp.float32)]
        gathered_bytes = table_bytes
        resident = 2 * table_bytes
    else:
        emb_in = jnp.zeros((V, D_pad), emb_table.dtype).at[:, :D].set(emb_table)
        emb_spec = pl.BlockSpec(memory_space=pl.ANY)
        kernel = _make_hbm_kernel(TB, S, D_pad, B, lhs_dtype)
        scratch = [pltpu.VMEM((2, S, D_pad), emb_table.dtype),
                   pltpu.SemaphoreType.DMA((2,)),
                   pltpu.VMEM((TB, D_pad), jnp.float32)]
        gathered_bytes = B * S * D_pad * emb_itemsize
        resident = 2 * S * D_pad * emb_itemsize

    # ---- VMEM budget (generation aware) ------------------------------------
    resident += (2 * D_pad * TO * jnp.dtype(w.dtype).itemsize    # weight tile (x2 buf)
                 + 2 * TO * 4 + 2 * TB * TO * 4                  # bias + output tiles
                 + TB * D_pad * 4)                               # f32 accumulator
    try:
        kind = jax.devices()[0].device_kind.lower()
    except Exception:
        kind = ""
    big_vmem = ("v5" in kind) or ("v6" in kind)                  # 128 MiB physical
    vmem_cap = (100 if big_vmem else 48) * 2**20                 # conservative on v7x
    vmem_limit = int(min(vmem_cap, max(32 * 2**20, resident * 3 // 2 + (1 << 20))))

    cost = pl.CostEstimate(
        flops=2 * B_pad * D_pad * O_padf + 2 * B * S * D_pad,
        transcendentals=0,
        bytes_accessed=int(gathered_bytes
                           + D_pad * O_padf * jnp.dtype(w.dtype).itemsize
                           + B_pad * O_padf * 4 + B_pad * S * 4),
    )

    out = pl.pallas_call(
        kernel,
        out_shape=jax.ShapeDtypeStruct((B_pad, O_padf), jnp.float32),
        grid_spec=pltpu.PrefetchScalarGridSpec(
            num_scalar_prefetch=0,
            grid=(n_bt, n_ot),
            in_specs=[
                pl.BlockSpec((TB, S), lambda bt, ot: (bt, 0),
                             memory_space=pltpu.MemorySpace.SMEM),   # token ids
                emb_spec,                                            # embedding table
                pl.BlockSpec((D_pad, TO), lambda bt, ot: (0, ot)),   # fc weight tile
                pl.BlockSpec((1, TO), lambda bt, ot: (0, ot)),       # fc bias tile
            ],
            out_specs=pl.BlockSpec((TB, TO), lambda bt, ot: (bt, ot)),
            scratch_shapes=scratch,
        ),
        compiler_params=pltpu.CompilerParams(
            dimension_semantics=("parallel", "arbitrary"),
            vmem_limit_bytes=vmem_limit,
        ),
        cost_estimate=cost,
    )(tok, emb_in, w_pad, b_pad)

    return out[:B, :O]


if __name__ == "__main__":
    # Small, deterministic problem sizes consistent with the module.
    vocab_size = 50
    embedding_dim = 32
    output_dim = 4
    seq_len = 8
    batch = 2

    key = jax.random.PRNGKey(0)
    k_emb, k_w, k_b, k_x = jax.random.split(key, 4)

    emb_table = jax.random.normal(k_emb, (vocab_size, embedding_dim), dtype=jnp.float32)
    # PyTorch nn.Linear stores weight as [out, in]; we keep it transposed as [in, out].
    w = jax.random.normal(k_w, (embedding_dim, output_dim), dtype=jnp.float32) * 0.1
    b = jax.random.normal(k_b, (output_dim,), dtype=jnp.float32) * 0.1
    x = jax.random.randint(k_x, (seq_len, batch), 0, vocab_size, dtype=jnp.int32)

    # Pure-JAX reference of the PyTorch forward (embed -> permute -> mean -> fc).
    embedded_ref = jnp.take(emb_table, x, axis=0).transpose(1, 0, 2)   # [B, S, D]
    ref = embedded_ref.mean(axis=1) @ w + b                            # [B, O]

    # Fast path: embedding table resident in VMEM.
    out_vmem = fasttext_forward(x, emb_table, w, b)
    jax.block_until_ready(out_vmem)
    assert out_vmem.shape == (batch, output_dim)
    assert jnp.allclose(out_vmem, ref, atol=1e-5, rtol=1e-5), (out_vmem, ref)

    # Large-vocab path: table stays in HBM, chunked double-buffered DMA gather.
    out_hbm = fasttext_forward(x, emb_table, w, b, force_hbm_gather=True)
    jax.block_until_ready(out_hbm)
    assert jnp.allclose(out_hbm, ref, atol=1e-5, rtol=1e-5), (out_hbm, ref)

    print("KERNEL_OK")
</pallas_src>

<mosaic_0001>
module attributes {stable_mosaic.version = 11 : i64} {
  func.func @kernel(%arg0: i32, %arg1: i32, %arg2: memref<8x8xi32, #tpu.memory_space<smem>>, %arg3: memref<56x128xf32, #tpu.memory_space<vmem>>, %arg4: memref<128x128xf32, #tpu.memory_space<vmem>>, %arg5: memref<1x128xf32, #tpu.memory_space<vmem>>, %arg6: memref<8x128xf32, #tpu.memory_space<vmem>>, %arg7: memref<8x128xf32, #tpu.memory_space<vmem>>) attributes {dimension_semantics = [#tpu.dimension_semantics<parallel>, #tpu.dimension_semantics<arbitrary>], iteration_bounds = array<i64: 1, 1>, scalar_prefetch = 0 : i64, scratch_operands = 1 : i64, tpu.core_type = #tpu.core_type<tc>, window_params = [{transform_indices = @transform_0, window_bounds = array<i64: 8, 8>}, {pipeline_mode = #tpu.pipeline_mode<synchronous>, transform_indices = @transform_1, window_bounds = array<i64: 56, 128>}, {transform_indices = @transform_2, window_bounds = array<i64: 128, 128>}, {transform_indices = @transform_3, window_bounds = array<i64: 1, 128>}, {transform_indices = @transform_4, window_bounds = array<i64: 8, 128>}]} {
    %c0_i32 = arith.constant 0 : i32
    %0 = arith.cmpi eq, %arg1, %c0_i32 : i32
    %1 = arith.extui %0 : i1 to i32
    %c0_i32_0 = arith.constant 0 : i32
    %2 = arith.cmpi ne, %1, %c0_i32_0 : i32
    scf.if %2 {
      %cst_9 = arith.constant 0.000000e+00 : f32
      %12 = vector.broadcast %cst_9 : f32 to vector<8x128xf32>
      %c0_10 = arith.constant 0 : index
      %c0_11 = arith.constant 0 : index
      %13 = vector.load %arg7[%c0_10, %c0_11] : memref<8x128xf32, #tpu.memory_space<vmem>>, vector<8x128xf32>
      tpu.vector_store %arg7[%c0_10, %c0_11], %12 {strides = array<i32>} : memref<8x128xf32, #tpu.memory_space<vmem>>, vector<8x128xf32>,
      %c8_i32 = arith.constant 8 : i32
      %14 = arith.muli %arg0, %c8_i32 : i32
      %c2_i32 = arith.constant 2 : i32
      %15 = arith.subi %c2_i32, %14 : i32
      %c8_i32_12 = arith.constant 8 : i32
      %16 = arith.minsi %c8_i32_12, %15 : i32
      %c0_i32_13 = arith.constant 0 : i32
      %17 = arith.subi %16, %c0_i32_13 : i32
      %c1_i32 = arith.constant 1 : i32
      %c1_i32_14 = arith.constant 1 : i32
      %18 = arith.subi %c1_i32, %c1_i32_14 : i32
      %19 = arith.addi %17, %18 : i32
      %c1_i32_15 = arith.constant 1 : i32
      %20 = arith.divsi %19, %c1_i32_15 : i32
      %c1_i32_16 = arith.constant 1 : i32
      %c0_i32_17 = arith.constant 0 : i32
      %c0_i32_18 = arith.constant 0 : i32
      %21 = arith.subi %20, %c0_i32_18 : i32
      %22 = arith.addi %c0_i32_18, %21 : i32
      %c1_i32_19 = arith.constant 1 : i32
      scf.for %arg8 = %c0_i32_18 to %22 step %c1_i32_19  : i32 {
        %23 = arith.muli %arg8, %c1_i32_16 : i32
        %24 = arith.addi %c0_i32_17, %23 : i32
        %cst_20 = arith.constant 0.000000e+00 : f32
        %25 = vector.broadcast %cst_20 : f32 to vector<1x128xf32>
        %c0_i32_21 = arith.constant 0 : i32
        %26 = arith.index_cast %24 : i32 to index
        %27 = arith.index_cast %c0_i32_21 : i32 to index
        %28 = memref.load %arg2[%26, %27] : memref<8x8xi32, #tpu.memory_space<smem>>
        %29 = arith.index_cast %28 : i32 to index
        %c0_22 = arith.constant 0 : index
        %30 = vector.load %arg3[%29, %c0_22] : memref<56x128xf32, #tpu.memory_space<vmem>>, vector<1x128xf32>
        %31 = arith.addf %25, %30 : vector<1x128xf32>
        %c1_i32_23 = arith.constant 1 : i32
        %32 = arith.index_cast %24 : i32 to index
        %33 = arith.index_cast %c1_i32_23 : i32 to index
        %34 = memref.load %arg2[%32, %33] : memref<8x8xi32, #tpu.memory_space<smem>>
        %35 = arith.index_cast %34 : i32 to index
        %c0_24 = arith.constant 0 : index
        %36 = vector.load %arg3[%35, %c0_24] : memref<56x128xf32, #tpu.memory_space<vmem>>, vector<1x128xf32>
        %37 = arith.addf %31, %36 : vector<1x128xf32>
        %c2_i32_25 = arith.constant 2 : i32
        %38 = arith.index_cast %24 : i32 to index
        %39 = arith.index_cast %c2_i32_25 : i32 to index
        %40 = memref.load %arg2[%38, %39] : memref<8x8xi32, #tpu.memory_space<smem>>
        %41 = arith.index_cast %40 : i32 to index
        %c0_26 = arith.constant 0 : index
        %42 = vector.load %arg3[%41, %c0_26] : memref<56x128xf32, #tpu.memory_space<vmem>>, vector<1x128xf32>
        %43 = arith.addf %37, %42 : vector<1x128xf32>
        %c3_i32 = arith.constant 3 : i32
        %44 = arith.index_cast %24 : i32 to index
        %45 = arith.index_cast %c3_i32 : i32 to index
        %46 = memref.load %arg2[%44, %45] : memref<8x8xi32, #tpu.memory_space<smem>>
        %47 = arith.index_cast %46 : i32 to index
        %c0_27 = arith.constant 0 : index
        %48 = vector.load %arg3[%47, %c0_27] : memref<56x128xf32, #tpu.memory_space<vmem>>, vector<1x128xf32>
        %49 = arith.addf %43, %48 : vector<1x128xf32>
        %c4_i32 = arith.constant 4 : i32
        %50 = arith.index_cast %24 : i32 to index
        %51 = arith.index_cast %c4_i32 : i32 to index
        %52 = memref.load %arg2[%50, %51] : memref<8x8xi32, #tpu.memory_space<smem>>
        %53 = arith.index_cast %52 : i32 to index
        %c0_28 = arith.constant 0 : index
        %54 = vector.load %arg3[%53, %c0_28] : memref<56x128xf32, #tpu.memory_space<vmem>>, vector<1x128xf32>
        %55 = arith.addf %49, %54 : vector<1x128xf32>
        %c5_i32 = arith.constant 5 : i32
        %56 = arith.index_cast %24 : i32 to index
        %57 = arith.index_cast %c5_i32 : i32 to index
        %58 = memref.load %arg2[%56, %57] : memref<8x8xi32, #tpu.memory_space<smem>>
        %59 = arith.index_cast %58 : i32 to index
        %c0_29 = arith.constant 0 : index
        %60 = vector.load %arg3[%59, %c0_29] : memref<56x128xf32, #tpu.memory_space<vmem>>, vector<1x128xf32>
        %61 = arith.addf %55, %60 : vector<1x128xf32>
        %c6_i32 = arith.constant 6 : i32
        %62 = arith.index_cast %24 : i32 to index
        %63 = arith.index_cast %c6_i32 : i32 to index
        %64 = memref.load %arg2[%62, %63] : memref<8x8xi32, #tpu.memory_space<smem>>
        %65 = arith.index_cast %64 : i32 to index
        %c0_30 = arith.constant 0 : index
        %66 = vector.load %arg3[%65, %c0_30] : memref<56x128xf32, #tpu.memory_space<vmem>>, vector<1x128xf32>
        %67 = arith.addf %61, %66 : vector<1x128xf32>
        %c7_i32 = arith.constant 7 : i32
        %68 = arith.index_cast %24 : i32 to index
        %69 = arith.index_cast %c7_i32 : i32 to index
        %70 = memref.load %arg2[%68, %69] : memref<8x8xi32, #tpu.memory_space<smem>>
        %71 = arith.index_cast %70 : i32 to index
        %c0_31 = arith.constant 0 : index
        %72 = vector.load %arg3[%71, %c0_31] : memref<56x128xf32, #tpu.memory_space<vmem>>, vector<1x128xf32>
        %73 = arith.addf %67, %72 : vector<1x128xf32>
        %c8_i32_32 = arith.constant 8 : i32
        %74 = arith.index_cast %24 : i32 to index
        %c0_33 = arith.constant 0 : index
        %75 = vector.load %arg7[%74, %c0_33] : memref<8x128xf32, #tpu.memory_space<vmem>>, vector<1x128xf32>
        tpu.vector_store %arg7[%74, %c0_33], %73 {strides = array<i32>} : memref<8x128xf32, #tpu.memory_space<vmem>>, vector<1x128xf32>,
      }
    } else {
    }
    %c0 = arith.constant 0 : index
    %c0_1 = arith.constant 0 : index
    %3 = vector.load %arg7[%c0, %c0_1] : memref<8x128xf32, #tpu.memory_space<vmem>>, vector<8x128xf32>
    %c0_2 = arith.constant 0 : index
    %c0_3 = arith.constant 0 : index
    %4 = vector.load %arg4[%c0_2, %c0_3] : memref<128x128xf32, #tpu.memory_space<vmem>>, vector<128x128xf32>
    %cst = arith.constant dense<0.000000e+00> : vector<8x128xf32>
    %5 = tpu.matmul %3, %4, %cst {dimension_numbers = #tpu.dot_dimension_numbers<[1], [0], [0], [1], [0, 0, 1, 1], [], []>} : vector<8x128xf32>, vector<128x128xf32>, vector<8x128xf32> -> vector<8x128xf32>
    %cst_4 = arith.constant 1.250000e-01 : f32
    %6 = vector.broadcast %cst_4 : f32 to vector<8x128xf32>
    %7 = arith.mulf %5, %6 : vector<8x128xf32>
    %c0_5 = arith.constant 0 : index
    %c0_6 = arith.constant 0 : index
    %8 = vector.load %arg5[%c0_5, %c0_6] : memref<1x128xf32, #tpu.memory_space<vmem>>, vector<1x128xf32>
    %9 = vector.broadcast %8 : vector<1x128xf32> to vector<8x128xf32>
    %10 = arith.addf %7, %9 : vector<8x128xf32>
    %c0_7 = arith.constant 0 : index
    %c0_8 = arith.constant 0 : index
    %11 = vector.load %arg6[%c0_7, %c0_8] : memref<8x128xf32, #tpu.memory_space<vmem>>, vector<8x128xf32>
    tpu.vector_store %arg6[%c0_7, %c0_8], %10 {strides = array<i32>} : memref<8x128xf32, #tpu.memory_space<vmem>>, vector<8x128xf32>,
    return
  }
  func.func @transform_0(%arg0: i32, %arg1: i32) -> (i32, i32) {
    %c0_i32 = arith.constant 0 : i32
    %c0_i32_0 = arith.constant 0 : i32
    return %arg0, %c0_i32 : i32, i32
  }
  func.func @transform_1(%arg0: i32, %arg1: i32) -> (i32, i32) {
    %c0_i32 = arith.constant 0 : i32
    %c0_i32_0 = arith.constant 0 : i32
    %c0_i32_1 = arith.constant 0 : i32
    return %c0_i32, %c0_i32_0 : i32, i32
  }
  func.func @transform_2(%arg0: i32, %arg1: i32) -> (i32, i32) {
    %c0_i32 = arith.constant 0 : i32
    %c0_i32_0 = arith.constant 0 : i32
    return %c0_i32, %arg1 : i32, i32
  }
  func.func @transform_3(%arg0: i32, %arg1: i32) -> (i32, i32) {
    %c0_i32 = arith.constant 0 : i32
    %c0_i32_0 = arith.constant 0 : i32
    return %c0_i32, %arg1 : i32, i32
  }
  func.func @transform_4(%arg0: i32, %arg1: i32) -> (i32, i32) {
    %c0_i32 = arith.constant 0 : i32
    return %arg0, %arg1 : i32, i32
  }
}

</mosaic_0001>

<llo_original>
// kernel: tpu_custom_call.1
$region0: #{tpu_custom_call.1}
  #allocation0 [shape = 'u32[]', space=smem, size = 0x4, offset = 0x4, fixed_abs, tag = 'smem constant byte address 0x4 - core index']
  #allocation1 [shape = 'u32[72,128]{1,0:T(1,128)}', space=vmem, size = 0x9000, scoped, tag = 'internal scratch']
  #allocation2 [shape = 'f32[8,128]{1,0:T(8,128)}', space=vmem, size = 0x1000, scoped, tag = 'scratch operand']
  %s0 = inlined_call_operand.hbm [shape: s32[8,8], index: 0, kind: input, shape index: {}]
  %s1 = inlined_call_operand.hbm [shape: f32[56,128], index: 1, kind: input, shape index: {}]
  %s2 = inlined_call_operand.hbm [shape: f32[128,128], index: 2, kind: input, shape index: {}]
  %s3 = inlined_call_operand.vmem [shape: f32[1,128], index: 3, kind: input, shape index: {}]
  %s4 = inlined_call_operand.hbm [shape: f32[8,128], index: 4, kind: output, shape index: {}]
  %s5 = sld [smem:[#allocation0]]
  $region49: #{tpu_custom_call.1} parent=0
    _
  %s7 = ssub.s32 1, %s5
  %s8 = scalar_select 0, %s7, %s5
  $region1: #{tpu_custom_call.1} parent=0
    #allocation3 [shape = 'u8[4096]{0}', space=smem, size = 0x1000, scoped, tag = 'input window, operand 0, single buffered']
    #allocation4 [shape = 's32[1]{0}', space=sflag, size = 0x4, scoped, tag = 'scoped memory for tpu_custom_call.1']
    #allocation5 [shape = 's32[1]{0}', space=sflag, size = 0x4, scoped, tag = 'scoped memory for tpu_custom_call.1']
    #allocation6 [shape = 's32[1]{0}', space=sflag, size = 0x4, scoped, tag = 'scoped memory for tpu_custom_call.1']
    #allocation7 [shape = 'u8[28672]{0}', space=vmem, size = 0x7000, scoped, tag = 'input window, operand 1, single buffered']
    #allocation8 [shape = 'u8[65536]{0}', space=vmem, size = 0x10000, scoped, tag = 'input window, operand 2, single buffered']
    #allocation9 [shape = 's32[1]{0}', space=sflag, size = 0x4, scoped, tag = 'scoped memory for tpu_custom_call.1']
    #allocation10 [shape = 'u8[4096]{0}', space=vmem, size = 0x1000, scoped, tag = 'output window, operand 0, single buffered']
    %9 = vsyncpa [#allocation6], 0
    %10 = vsyncpa [#allocation4], 0
    %11 = vsyncpa [#allocation9], 0
    %12 = vsyncpa [#allocation5], 0
    // Predicated region
    $region2: #{tpu_custom_call.1} parent=1 // pred_check
      _
    $region3: #{tpu_custom_call.1} parent=1 // pred_check_branch
      %14 = sbr.rel (0) target = $region5
    $region4: #{tpu_custom_call.1} parent=1 // pred_region
      %16 = vsyncadd [#allocation6], 0
      %s18 = sshll.u32 %s0, 4
      %s19 = int_to_ptr.hbm [resolvable:$true] %s18
      %21 = dma.hbm_to_smem %s19, 128, [#allocation3], [#allocation6]
    $region5: #{tpu_custom_call.1} parent=1 // pred_fallthru
      _
    // Predicated region
    $region6: #{tpu_custom_call.1} parent=1 // pred_check
      _
    $region7: #{tpu_custom_call.1} parent=1 // pred_check_branch
      %23 = sbr.rel (0) target = $region9
    $region8: #{tpu_custom_call.1} parent=1 // pred_region
      %25 = vsyncadd [#allocation4], 0
      %s26 = sshll.u32 %s1, 4
      %s27 = int_to_ptr.hbm [resolvable:$true] %s26
      %s28 = sshll.u32 [#allocation7], 4
      %s29 = int_to_ptr.vmem [resolvable:$true] %s28
      %34 = dma.hbm_to_vmem [thread:$0]  %s27, 896, %s29, [#allocation4], 128, 128, 8
    $region9: #{tpu_custom_call.1} parent=1 // pred_fallthru
      _
    // Predicated region
    $region10: #{tpu_custom_call.1} parent=1 // pred_check
      _
    $region11: #{tpu_custom_call.1} parent=1 // pred_check_branch
      %36 = sbr.rel (0) target = $region13
    $region12: #{tpu_custom_call.1} parent=1 // pred_region
      %38 = vsyncadd [#allocation9], 0
      %s39 = sshll.u32 %s2, 4
      %s40 = int_to_ptr.hbm [resolvable:$true] %s39
      %s41 = sshll.u32 [#allocation8], 4
      %s42 = int_to_ptr.vmem [resolvable:$true] %s41
      %47 = dma.hbm_to_vmem [thread:$0]  %s40, 2048, %s42, [#allocation9], 128, 128, 8
    $region13: #{tpu_custom_call.1} parent=1 // pred_fallthru
      _
    // Predicated region
    $region14: #{tpu_custom_call.1} parent=1 // pred_check
      _
    $region15: #{tpu_custom_call.1} parent=1 // pred_check_branch
      %49 = sbr.rel (0) target = $region17
    $region16: #{tpu_custom_call.1} parent=1 // pred_region
      _
    $region17: #{tpu_custom_call.1} parent=1 // pred_fallthru
      _
    // Predicated region
    $region18: #{tpu_custom_call.1} parent=1 // pred_check
      _
    $region19: #{tpu_custom_call.1} parent=1 // pred_check_branch
      %51 = sbr.rel (0) target = $region21
    $region20: #{tpu_custom_call.1} parent=1 // pred_region
      %53 = dma.done [#allocation6], 128
    $region21: #{tpu_custom_call.1} parent=1 // pred_fallthru
      _
    // Predicated region
    $region22: #{tpu_custom_call.1} parent=1 // pred_check
      _
    $region23: #{tpu_custom_call.1} parent=1 // pred_check_branch
      %55 = sbr.rel (0) target = $region25
    $region24: #{tpu_custom_call.1} parent=1 // pred_region
      %57 = dma.done [#allocation4], 896
    $region25: #{tpu_custom_call.1} parent=1 // pred_fallthru
      _
    // Predicated region
    $region26: #{tpu_custom_call.1} parent=1 // pred_check
      _
    $region27: #{tpu_custom_call.1} parent=1 // pred_check_branch
      %59 = sbr.rel (0) target = $region29
    $region28: #{tpu_custom_call.1} parent=1 // pred_region
      %61 = dma.done [#allocation9], 2048
    $region29: #{tpu_custom_call.1} parent=1 // pred_fallthru
      _
    %62 = sfence
    %p63 = scmp.eq.s32.totalorder 0, 0
    // Predicated region
    $region30: #{tpu_custom_call.1} parent=1 // pred_check
      %p64 = pneg %p63
    $region31: #{tpu_custom_call.1} parent=1 // pred_check_branch
      %66 = sbr.rel (%p64) target = $region33
    $region32: #{tpu_custom_call.1} parent=1 // pred_region
      %67 = vst [vmem:[#allocation2] sm:$0xff] 0.0
      %s68 = smul.u32 0, 8
      %s69 = ssub.s32 2, %s68
      %p70 = scmp.lt.s32.totalorder %s69, 8
      %s71 = scalar_select %p70, %s69, 8
      // While loop
      $region34: #{tpu_custom_call.1} parent=32 // loop_pre_header
        _
      $region35: #{tpu_custom_call.1} parent=32 // loop_header
        %s73 = sphi 0, %s75
        %p74 = scmp.ge.s32.totalorder %s73, %s71
      $region36: #{tpu_custom_call.1} parent=32 // loop_header_branch
        %77 = sbr.rel (%p74) target = $region40
      $region37: #{tpu_custom_call.1} parent=32 // loop_body
        %s78 = smul.u32 %s73, 128
        %s79 = sld [smem:[#allocation3 + %s78]]
        %s80 = scalar_lea.vmem [#allocation7], %s79
        %v81 = vld [vmem:[%s80] sm:$0x1]
        %v82 = vadd.f32 %v81, 0.0
        %s83 = sadd.s32 %s78, 1
        %s84 = sld [smem:[#allocation3 + %s83]]
        %s85 = scalar_lea.vmem [#allocation7], %s84
        %v86 = vld [vmem:[%s85] sm:$0x1]
        %v87 = vadd.f32 %v82, %v86
        %s88 = sadd.s32 %s78, 2
        %s89 = sld [smem:[#allocation3 + %s88]]
        %s90 = scalar_lea.vmem [#allocation7], %s89
        %v91 = vld [vmem:[%s90] sm:$0x1]
        %v92 = vadd.f32 %v87, %v91
        %s93 = sadd.s32 %s78, 3
        %s94 = sld [smem:[#allocation3 + %s93]]
        %s95 = scalar_lea.vmem [#allocation7], %s94
        %v96 = vld [vmem:[%s95] sm:$0x1]
        %v97 = vadd.f32 %v92, %v96
        %s98 = sadd.s32 %s78, 4
        %s99 = sld [smem:[#allocation3 + %s98]]
        %s100 = scalar_lea.vmem [#allocation7], %s99
        %v101 = vld [vmem:[%s100] sm:$0x1]
        %v102 = vadd.f32 %v97, %v101
        %s103 = sadd.s32 %s78, 5
        %s104 = sld [smem:[#allocation3 + %s103]]
        %s105 = scalar_lea.vmem [#allocation7], %s104
        %v106 = vld [vmem:[%s105] sm:$0x1]
        %v107 = vadd.f32 %v102, %v106
        %s108 = sadd.s32 %s78, 6
        %s109 = sld [smem:[#allocation3 + %s108]]
        %s110 = scalar_lea.vmem [#allocation7], %s109
        %v111 = vld [vmem:[%s110] sm:$0x1]
        %v112 = vadd.f32 %v107, %v111
        %s113 = sadd.s32 %s78, 7
        %s114 = sld [smem:[#allocation3 + %s113]]
        %s115 = scalar_lea.vmem [#allocation7], %s114
        %v116 = vld [vmem:[%s115] sm:$0x1]
        %v117 = vadd.f32 %v112, %v116
        %s118 = scalar_lea.vmem [#allocation2], %s73
        %119 = vst [vmem:[%s118] sm:$0x1] %v117
      $region38: #{tpu_custom_call.1} parent=32 // loop_footer
        %s75 = sadd.s32 %s73, 1
      $region39: #{tpu_custom_call.1} parent=32 // loop_footer_branch
        %72 = sbr.rel target = $region35
      $region40: #{tpu_custom_call.1} parent=32 // loop_exit
        _
    $region33: #{tpu_custom_call.1} parent=1 // pred_fallthru
      _
    %v120 = vld [vmem:[#allocation2] sm:$0xff]
    %v121 = vld [vmem:[#allocation8] sm:$0xff]
    %v122 = vld [vmem:[#allocation8 + $0x8] sm:$0xff]
    %v123 = vld [vmem:[#allocation8 + $0x10] sm:$0xff]
    %v124 = vld [vmem:[#allocation8 + $0x18] sm:$0xff]
    %v125 = vld [vmem:[#allocation8 + $0x20] sm:$0xff]
    %v126 = vld [vmem:[#allocation8 + $0x28] sm:$0xff]
    %v127 = vld [vmem:[#allocation8 + $0x30] sm:$0xff]
    %v128 = vld [vmem:[#allocation8 + $0x38] sm:$0xff]
    %v129 = vld [vmem:[#allocation8 + $0x40] sm:$0xff]
    %v130 = vld [vmem:[#allocation8 + $0x48] sm:$0xff]
    %v131 = vld [vmem:[#allocation8 + $0x50] sm:$0xff]
    %v132 = vld [vmem:[#allocation8 + $0x58] sm:$0xff]
    %v133 = vld [vmem:[#allocation8 + $0x60] sm:$0xff]
    %v134 = vld [vmem:[#allocation8 + $0x68] sm:$0xff]
    %v135 = vld [vmem:[#allocation8 + $0x70] sm:$0xff]
    %v136 = vld [vmem:[#allocation8 + $0x78] sm:$0xff]
    %137 = vmatpush.msra.mxu0 %v136
    %138 = vmatpush.msra.mxu0 %v135
    %139 = vmatpush.msra.mxu0 %v134
    %140 = vmatpush.msra.mxu0 %v133
    %141 = vmatpush.msra.mxu0 %v132
    %142 = vmatpush.msra.mxu0 %v131
    %143 = vmatpush.msra.mxu0 %v130
    %144 = vmatpush.msra.mxu0 %v129
    %145 = vmatpush.msra.mxu0 %v128
    %146 = vmatpush.msra.mxu0 %v127
    %147 = vmatpush.msra.mxu0 %v126
    %148 = vmatpush.msra.mxu0 %v125
    %149 = vmatpush.msra.mxu0 %v124
    %150 = vmatpush.msra.mxu0 %v123
    %151 = vmatpush.msra.mxu0 %v122
    %152 = vmatpush.msra.mxu0 %v121
    %153 = vmatmul.f32.gmra.mxu0 %v120
    %v154 = vpop.f32.mrf.mxu0
    %v155 = vadd.f32 0.0, %v154
    %156 = vdwg.mxu0
    %v157 = vmul.f32 %v155, 0.125
    %v158 = vld [vmem:[%s3] sm:$0x1]
    %v160 = vperm.slane %v158, 0
    %v162 = vadd.f32 %v157, %v160
    %163 = vst [vmem:[#allocation10] sm:$0xff] %v162
    // Predicated region
    $region41: #{tpu_custom_call.1} parent=1 // pred_check
      _
    $region42: #{tpu_custom_call.1} parent=1 // pred_check_branch
      %165 = sbr.rel (0) target = $region44
    $region43: #{tpu_custom_call.1} parent=1 // pred_region
      %167 = vsyncadd [#allocation5], 0
      %s169 = sshll.u32 [#allocation10], 4
      %s170 = int_to_ptr.vmem [resolvable:$true] %s169
      %s171 = sshll.u32 %s4, 4
      %s172 = int_to_ptr.hbm [resolvable:$true] %s171
      %174 = dma.vmem_to_hbm [thread:$0]  %s170, 128, %s172, [#allocation5]
    $region44: #{tpu_custom_call.1} parent=1 // pred_fallthru
      _
    // Predicated region
    $region45: #{tpu_custom_call.1} parent=1 // pred_check
      _
    $region46: #{tpu_custom_call.1} parent=1 // pred_check_branch
      %176 = sbr.rel (0) target = $region48
    $region47: #{tpu_custom_call.1} parent=1 // pred_region
      %178 = dma.done [#allocation5], 128
    $region48: #{tpu_custom_call.1} parent=1 // pred_fallthru
      _
    %179 = vsyncpa [#allocation4], 1
    %180 = vsyncpa [#allocation9], 1
    %181 = vsyncpa [#allocation5], 1
    %182 = vsyncpa [#allocation6], 1

</llo_original>
